<compile_context>
chip_gen: v7x
topology: tpu7x:2x2x1
jax: 0.10.0
libtpu: 0.0.40
codegen_flags: <defaults>
</compile_context>

<pallas_src>
import functools

import jax
import jax.numpy as jnp
from jax.experimental import pallas as pl
from jax.experimental.pallas import tpu as pltpu


# ----------------------------------------------------------------------------
# Kernel
# ----------------------------------------------------------------------------
def _upsample_nearest_kernel(x_ref, o_ref, *, scale: int):
    # x_ref: (cb, H, W) ; o_ref: (cb, H, scale * W * scale)
    #
    # Output layout: for a fixed (c, h), the last dim holds `scale` contiguous
    # copies of the width-upsampled row, i.e. o[c, h, j*W*s + k] corresponds to
    # output pixel (c, h*s + j, k) = input (c, h, k // s).
    x = x_ref[...]
    # Width (nearest) replication along the lane axis.
    r = jnp.repeat(x, scale, axis=-1)                     # (cb, H, W*scale)
    # Height replication = `scale` contiguous lane copies of the row.
    o_ref[...] = jnp.concatenate([r] * scale, axis=-1)    # (cb, H, scale*W*scale)


# ----------------------------------------------------------------------------
# Tiling / budgeting helpers
# ----------------------------------------------------------------------------
def _round_up(x: int, m: int) -> int:
    return ((x + m - 1) // m) * m


def _tpu_generation_params():
    """(per-stage padded VMEM budget, min grid steps, vmem_limit_bytes)."""
    kind = ""
    try:
        kind = jax.devices()[0].device_kind.lower()
    except Exception:  # pragma: no cover - defensive, fall back to conservative
        pass
    if "v6" in kind:
        # v6e: 128 MiB VMEM (32 MiB default scoped) -> raise limit, bigger tiles.
        return 14 * 1024 * 1024, 3, 64 * 1024 * 1024
    if "7" in kind:
        # v7x: 64 MiB VMEM per TC, 2 TCs; keep double-buffered footprint <= ~24 MiB
        # and leave >= 4 grid steps so each core can overlap out-DMA with in-DMA.
        return 12 * 1024 * 1024, 4, 48 * 1024 * 1024
    # v5e (or unknown): smallest default scoped VMEM (16 MiB), single TensorCore.
    return 6 * 1024 * 1024, 3, 32 * 1024 * 1024


def _choose_channel_block(nc: int, h: int, w: int, scale: int, itemsize: int,
                          per_stage_budget: int, min_steps: int) -> int:
    """Channel-block size from PADDED tile sizes; need not divide nc."""
    sublane = max(8, 32 // itemsize)               # f32: 8, bf16: 16, int8: 32
    in_pad = _round_up(h, sublane) * _round_up(w, 128)
    out_pad = _round_up(h, sublane) * _round_up(w * scale * scale, 128)
    per_c = (in_pad + out_pad) * itemsize          # padded bytes / channel / stage
    cb = max(1, per_stage_budget // per_c)         # double-buffering covered by budget
    if nc >= min_steps:
        cb = min(cb, max(1, nc // min_steps))      # keep >= min_steps grid steps
    return min(cb, nc)


# ----------------------------------------------------------------------------
# Public op
# ----------------------------------------------------------------------------
def upsample_nearest(x: jax.Array, scale_factor: int) -> jax.Array:
    """Nearest-neighbor upsample of an NCHW tensor by an integer scale factor."""
    assert int(scale_factor) == scale_factor and scale_factor >= 1
    s = int(scale_factor)
    N, C, H, W = x.shape
    if s == 1:
        return x

    NC = N * C
    itemsize = jnp.dtype(x.dtype).itemsize
    budget, min_steps, vmem_limit = _tpu_generation_params()
    cb = _choose_channel_block(NC, H, W, s, itemsize, budget, min_steps)
    num_blocks = pl.cdiv(NC, cb)

    x2 = x.reshape(NC, H, W)                       # free, contiguous view

    in_bytes = NC * H * W * itemsize
    out_bytes = in_bytes * s * s

    kernel = functools.partial(_upsample_nearest_kernel, scale=s)

    out = pl.pallas_call(
        kernel,
        out_shape=jax.ShapeDtypeStruct((NC, H, s * W * s), x.dtype),
        grid_spec=pltpu.PrefetchScalarGridSpec(
            num_scalar_prefetch=0,
            grid=(num_blocks,),
            in_specs=[
                pl.BlockSpec((cb, H, W), lambda i: (i, 0, 0)),
            ],
            out_specs=pl.BlockSpec((cb, H, s * W * s), lambda i: (i, 0, 0)),
        ),
        compiler_params=pltpu.CompilerParams(
            dimension_semantics=("parallel",),
            vmem_limit_bytes=vmem_limit,
        ),
        cost_estimate=pl.CostEstimate(
            flops=0, transcendentals=0, bytes_accessed=in_bytes + out_bytes),
    )(x2)

    # Free contiguous reshape: (NC, H, s*W*s) == (N, C, H*s, W*s) in memory.
    return out.reshape(N, C, H * s, W * s)


class Upsample:
    """JAX/Pallas mirror of the PyTorch Upsample module (nearest mode only)."""

    def __init__(self, scale_factor, mode="nearest"):
        # TODO(synk): only mode='nearest' with integer scale_factor is implemented
        # (the YOLOv3 module is always instantiated that way).
        assert mode == "nearest", "only nearest mode supported"
        self.scale_factor = int(scale_factor)
        self.mode = mode

    def __call__(self, x):
        return upsample_nearest(x, self.scale_factor)


def _reference_upsample_nearest(x, s):
    # Pure-JAX reference (matches F.interpolate(..., mode='nearest', scale_factor=s)).
    return jnp.repeat(jnp.repeat(x, s, axis=2), s, axis=3)


if __name__ == "__main__":
    key = jax.random.PRNGKey(0)

    # Primary small-shape check.
    N, C, H, W = 2, 4, 16, 16
    scale = 2
    x = jax.random.normal(key, (N, C, H, W), dtype=jnp.float32)

    mod = Upsample(scale_factor=scale, mode="nearest")
    out = jax.block_until_ready(mod(x))
    ref = _reference_upsample_nearest(x, scale)
    assert out.shape == (N, C, H * scale, W * scale), out.shape
    assert out.dtype == x.dtype
    assert jnp.allclose(out, ref), "mismatch vs reference nearest upsample"

    # YOLO-like odd spatial size.
    x2 = jax.random.normal(jax.random.PRNGKey(1), (1, 8, 13, 13), dtype=jnp.float32)
    out2 = jax.block_until_ready(upsample_nearest(x2, 2))
    assert jnp.allclose(out2, _reference_upsample_nearest(x2, 2))

    # Channel count that does not divide evenly -> exercises ragged tail block.
    x3 = jax.random.normal(jax.random.PRNGKey(2), (1, 7, 13, 13), dtype=jnp.float32)
    out3 = jax.block_until_ready(upsample_nearest(x3, 2))
    assert jnp.allclose(out3, _reference_upsample_nearest(x3, 2))

    # bf16 path (different sublane padding in the budget math; values are copies
    # so comparison is exact).
    x4 = jax.random.normal(jax.random.PRNGKey(3), (1, 4, 13, 13)).astype(jnp.bfloat16)
    out4 = jax.block_until_ready(upsample_nearest(x4, 2))
    assert jnp.array_equal(out4, _reference_upsample_nearest(x4, 2))

    print("KERNEL_OK")
</pallas_src>

<mosaic_0001>
module attributes {stable_mosaic.version = 11 : i64} {
  func.func @_upsample_nearest_kernel(%arg0: i32, %arg1: memref<2x16x16xf32, #tpu.memory_space<vmem>>, %arg2: memref<2x16x64xf32, #tpu.memory_space<vmem>>) attributes {dimension_semantics = [#tpu.dimension_semantics<parallel>], iteration_bounds = array<i64: 4>, scalar_prefetch = 0 : i64, scratch_operands = 0 : i64, tpu.core_type = #tpu.core_type<tc>, window_params = [{transform_indices = @transform_0, window_bounds = array<i64: 2, 16, 16>}, {transform_indices = @transform_1, window_bounds = array<i64: 2, 16, 64>}]} {
    %c0 = arith.constant 0 : index
    %c0_0 = arith.constant 0 : index
    %c0_1 = arith.constant 0 : index
    %0 = vector.load %arg1[%c0, %c0_0, %c0_1] : memref<2x16x16xf32, #tpu.memory_space<vmem>>, vector<2x16x16xf32>
    %1 = vector.shape_cast %0 : vector<2x16x16xf32> to vector<2x16x16x1xf32>
    %2 = vector.broadcast %1 : vector<2x16x16x1xf32> to vector<2x16x16x2xf32>
    %3 = vector.shape_cast %2 : vector<2x16x16x2xf32> to vector<2x16x32xf32>
    %4 = tpu.concatenate %3, %3 in 2 : vector<2x16x32xf32>, vector<2x16x32xf32> -> vector<2x16x64xf32>
    %c0_2 = arith.constant 0 : index
    %c0_3 = arith.constant 0 : index
    %c0_4 = arith.constant 0 : index
    %5 = vector.load %arg2[%c0_2, %c0_3, %c0_4] : memref<2x16x64xf32, #tpu.memory_space<vmem>>, vector<2x16x64xf32>
    tpu.vector_store %arg2[%c0_2, %c0_3, %c0_4], %4 {strides = array<i32>} : memref<2x16x64xf32, #tpu.memory_space<vmem>>, vector<2x16x64xf32>,
    return
  }
  func.func @transform_0(%arg0: i32) -> (i32, i32, i32) {
    %c0_i32 = arith.constant 0 : i32
    %c0_i32_0 = arith.constant 0 : i32
    %c0_i32_1 = arith.constant 0 : i32
    return %arg0, %c0_i32, %c0_i32_0 : i32, i32, i32
  }
  func.func @transform_1(%arg0: i32) -> (i32, i32, i32) {
    %c0_i32 = arith.constant 0 : i32
    %c0_i32_0 = arith.constant 0 : i32
    %c0_i32_1 = arith.constant 0 : i32
    return %arg0, %c0_i32, %c0_i32_0 : i32, i32, i32
  }
}

</mosaic_0001>

<llo_original>
// kernel: tpu_custom_call.1
$region0: #{tpu_custom_call.1}
  #allocation0 [shape = 'u32[]', space=smem, size = 0x4, offset = 0x4, fixed_abs, tag = 'smem constant byte address 0x4 - core index']
  #allocation1 [shape = 'u32[144,128]{1,0:T(1,128)}', space=vmem, size = 0x12000, scoped, tag = 'internal scratch']
  %s0 = inlined_call_operand.hbm [shape: f32[8,16,16], index: 0, kind: input, shape index: {}]
  %s1 = inlined_call_operand.hbm [shape: f32[8,16,64], index: 1, kind: output, shape index: {}]
  %s2 = sld [smem:[#allocation0]]
  $region41: #{tpu_custom_call.1} parent=0
    _
  %s4 = ssub.s32 1, %s2
  %s5 = scalar_select 0, %s4, %s2
  $region1: #{tpu_custom_call.1} parent=0
    #allocation2 [shape = 'u8[32768]{0}', space=vmem, size = 0x8000, scoped, tag = 'input window, operand 0']
    #allocation3 [shape = 's32[2]{0}', space=sflag, size = 0x8, scoped, tag = 'scoped memory for tpu_custom_call.1']
    #allocation4 [shape = 's32[2]{0}', space=sflag, size = 0x8, scoped, tag = 'scoped memory for tpu_custom_call.1']
    #allocation5 [shape = 'u8[32768]{0}', space=vmem, size = 0x8000, scoped, tag = 'output window, operand 0']
    %6 = vsyncpa [#allocation3], 0
    %s7 = scalar_lea.sflag [#allocation3], 1
    %8 = vsyncpa %s7, 0
    %9 = vsyncpa [#allocation4], 0
    %s10 = scalar_lea.sflag [#allocation4], 1
    %11 = vsyncpa %s10, 0
    loop: start=0, step=1, limit=6
    $region2: #{tpu_custom_call.1} parent=1 // loop_pre_header
      _
    $region3: #{tpu_custom_call.1} parent=1 // loop_header
      %s13 = sphi 0, %s17
      %p14 = scmp.ge.s32.totalorder %s13, 6
      %s23 = sphi 0, %s25
      %s26 = sphi 0, %s23
      %s27 = sphi 0, %s26
      %s43 = sphi 0, %s27
      %s49 = sphi 0, %s51
      %s52 = sphi 0, %s49
      %s53 = sphi 0, %s52
      %s69 = sphi 0, %s53
    $region4: #{tpu_custom_call.1} parent=1 // loop_header_branch
      %16 = sbr.rel (%p14) target = $region8
    $region5: #{tpu_custom_call.1} parent=1 // loop_body
      %s18 = ssub.s32 %s13, 1
      %s19 = ssub.s32 %s13, 2
      %s20 = sadd.s32 %s13, 1
      %s21 = ssub.s32 %s13, %s20
      %p22 = scmp.eq.s32.totalorder %s21, 0
      %s24 = sadd.s32 %s23, 1
      %s25 = scalar_select %p22, %s23, %s24
      %p28 = pneg %p22
      %p29 = scmp.eq.s32.totalorder %s13, 3
      %p30 = por %p28, %p29
      %p31 = scmp.ne.s32.totalorder %s23, %s26
      %p32 = scmp.eq.s32.totalorder %s13, 0
      %p33 = por %p31, %p32
      %p34 = scmp.ne.s32.totalorder %s23, %s26
      %p35 = scmp.eq.s32.totalorder %s18, 3
      %p36 = por %p34, %p35
      %p37 = scmp.ne.s32.totalorder %s26, %s27
      %p38 = scmp.eq.s32.totalorder %s18, 0
      %p39 = por %p37, %p38
      %p40 = scmp.ne.s32.totalorder %s26, %s27
      %p41 = scmp.eq.s32.totalorder %s19, 3
      %p42 = por %p40, %p41
      %p44 = scmp.ne.s32.totalorder %s27, %s43
      %p45 = scmp.eq.s32.totalorder %s19, 0
      %p46 = por %p44, %p45
      %s47 = ssub.s32 %s13, %s20
      %p48 = scmp.eq.s32.totalorder %s47, 0
      %s50 = sadd.s32 %s49, 1
      %s51 = scalar_select %p48, %s49, %s50
      %p54 = pneg %p48
      %p55 = scmp.eq.s32.totalorder %s13, 3
      %p56 = por %p54, %p55
      %p57 = scmp.ne.s32.totalorder %s49, %s52
      %p58 = scmp.eq.s32.totalorder %s13, 0
      %p59 = por %p57, %p58
      %p60 = scmp.ne.s32.totalorder %s49, %s52
      %p61 = scmp.eq.s32.totalorder %s18, 3
      %p62 = por %p60, %p61
      %p63 = scmp.ne.s32.totalorder %s52, %s53
      %p64 = scmp.eq.s32.totalorder %s18, 0
      %p65 = por %p63, %p64
      %p66 = scmp.ne.s32.totalorder %s52, %s53
      %p67 = scmp.eq.s32.totalorder %s19, 3
      %p68 = por %p66, %p67
      %p70 = scmp.ne.s32.totalorder %s53, %s69
      %p71 = scmp.eq.s32.totalorder %s19, 0
      %p72 = por %p70, %p71
      %p73 = scmp.le.s32.totalorder 1, %s13
      %p74 = scmp.lt.s32.totalorder %s13, 5
      %p75 = pnand %p73, %p74
      %p76 = pneg %p75
      // Predicated region
      $region9: #{tpu_custom_call.1} parent=5 // pred_check
        _
      $region10: #{tpu_custom_call.1} parent=5 // pred_check_branch
        %78 = sbr.rel (%p75) target = $region12
      $region11: #{tpu_custom_call.1} parent=5 // pred_region
        %s79 = ssub.s32 %s13, 1
      $region12: #{tpu_custom_call.1} parent=5 // pred_fallthru
        _
      %p80 = scmp.lt.s32.totalorder %s13, 4
      // Predicated region
      $region13: #{tpu_custom_call.1} parent=5 // pred_check
        %p81 = pneg %p80
      $region14: #{tpu_custom_call.1} parent=5 // pred_check_branch
        %83 = sbr.rel (%p81) target = $region16
      $region15: #{tpu_custom_call.1} parent=5 // pred_region
        // Predicated region
        $region17: #{tpu_custom_call.1} parent=15 // pred_check
          %p84 = pneg %p33
        $region18: #{tpu_custom_call.1} parent=15 // pred_check_branch
          %86 = sbr.rel (%p84) target = $region20
        $region19: #{tpu_custom_call.1} parent=15 // pred_region
          %s87 = sand.u32 %s23, 1
          %s88 = scalar_lea.sflag [#allocation3], %s87
          %s89 = sand.u32 %s23, 1
          %s90 = smul.addr %s89, 32
          %s91 = scalar_lea.vmem [#allocation2], %s90
          %s92 = smul.u32 2, %s13
          %s94 = ssub.s32 512, 512
          %95 = vsyncadd %s88, %s94
          %s96 = smul.addr %s92, 2
          %s97 = smul.addr %s96, 128
          %s98 = scalar_lea.hbm %s0, %s97
          %s99 = sshll.u32 %s91, 4
          %s100 = int_to_ptr.vmem [resolvable:$true] %s99
          %105 = dma.hbm_to_vmem [thread:$0]  %s98, 512, %s100, %s88, 128, 128, 8
        $region20: #{tpu_custom_call.1} parent=15 // pred_fallthru
          _
      $region16: #{tpu_custom_call.1} parent=5 // pred_fallthru
        _
      %p106 = scmp.le.s32.totalorder 1, %s13
      %p107 = scmp.lt.s32.totalorder %s13, 5
      %p108 = pnand %p106, %p107
      %p109 = pneg %p108
      // Predicated region
      $region21: #{tpu_custom_call.1} parent=5 // pred_check
        _
      $region22: #{tpu_custom_call.1} parent=5 // pred_check_branch
        %111 = sbr.rel (%p108) target = $region24
      $region23: #{tpu_custom_call.1} parent=5 // pred_region
        %s112 = ssub.s32 %s13, 1
        %s113 = sand.u32 %s26, 1
        %s114 = scalar_lea.sflag [#allocation3], %s113
        %s115 = sand.u32 %s26, 1
        %s116 = smul.addr %s115, 32
        %s117 = scalar_lea.vmem [#allocation2], %s116
        // Predicated region
        $region25: #{tpu_custom_call.1} parent=23 // pred_check
          %p118 = pneg %p39
        $region26: #{tpu_custom_call.1} parent=23 // pred_check_branch
          %120 = sbr.rel (%p118) target = $region28
        $region27: #{tpu_custom_call.1} parent=23 // pred_region
          %121 = dma.done %s114, 512
        $region28: #{tpu_custom_call.1} parent=23 // pred_fallthru
          _
        %s122 = sand.u32 %s26, 1
        %s123 = scalar_lea.sflag [#allocation3], %s122
        %s124 = sand.u32 %s26, 1
        %s125 = smul.addr %s124, 32
        %s126 = scalar_lea.vmem [#allocation2], %s125
        %p127 = pneg %p39
        %p128 = pneg %p36
        %p129 = pneg %p65
        %p130 = pneg %p62
        %s131 = sand.u32 %s52, 1
        %s132 = scalar_lea.sflag [#allocation4], %s131
        %s133 = sand.u32 %s52, 1
        %s134 = smul.addr %s133, 32
        %s135 = scalar_lea.vmem [#allocation5], %s134
        %s136 = smul.u32 2, %s18
        %s137 = smul.u32 2, %s18
        %v138 = vld [vmem:[%s117] sm:$0xff]
        %v139 = vld [vmem:[%s117 + $0x8] sm:$0xff]
        %v140 = vld [vmem:[%s117 + $0x10] sm:$0xff]
        %v141 = vld [vmem:[%s117 + $0x18] sm:$0xff]
        %v142 = vlaneseq
        %v143 = vshrl.u32 %v142, 7
        %v144 = vsub.s32 0, %v143
        %v145 = vrot.slane %v138, %v144
        %147 = vbcast.lane.b32.xlu0 %v145, 256
        %v148 = vpop.permute.xlu0 %147
        %s150 = sor.u32 256, 8
        %151 = vbcast.lane.b32.xlu0 %v145, %s150
        %v152 = vpop.permute.xlu0 %151
        %v153 = vlaneseq
        %v154 = vshrl.u32 %v153, 7
        %v155 = vsub.s32 1, %v154
        %v156 = vrot.slane %v138, %v155
        %158 = vbcast.lane.b32.xlu0 %v156, 256
        %v159 = vpop.permute.xlu0 %158
        %s161 = sor.u32 256, 8
        %162 = vbcast.lane.b32.xlu0 %v156, %s161
        %v163 = vpop.permute.xlu0 %162
        %v164 = vlaneseq
        %v165 = vshrl.u32 %v164, 7
        %v166 = vsub.s32 2, %v165
        %v167 = vrot.slane %v138, %v166
        %169 = vbcast.lane.b32.xlu0 %v167, 256
        %v170 = vpop.permute.xlu0 %169
        %s172 = sor.u32 256, 8
        %173 = vbcast.lane.b32.xlu0 %v167, %s172
        %v174 = vpop.permute.xlu0 %173
        %v175 = vlaneseq
        %v176 = vshrl.u32 %v175, 7
        %v177 = vsub.s32 3, %v176
        %v178 = vrot.slane %v138, %v177
        %180 = vbcast.lane.b32.xlu0 %v178, 256
        %v181 = vpop.permute.xlu0 %180
        %s183 = sor.u32 256, 8
        %184 = vbcast.lane.b32.xlu0 %v178, %s183
        %v185 = vpop.permute.xlu0 %184
        %v186 = vlaneseq
        %v187 = vshrl.u32 %v186, 7
        %v188 = vsub.s32 4, %v187
        %v189 = vrot.slane %v138, %v188
        %191 = vbcast.lane.b32.xlu0 %v189, 256
        %v192 = vpop.permute.xlu0 %191
        %s194 = sor.u32 256, 8
        %195 = vbcast.lane.b32.xlu0 %v189, %s194
        %v196 = vpop.permute.xlu0 %195
        %v197 = vlaneseq
        %v198 = vshrl.u32 %v197, 7
        %v199 = vsub.s32 5, %v198
        %v200 = vrot.slane %v138, %v199
        %202 = vbcast.lane.b32.xlu0 %v200, 256
        %v203 = vpop.permute.xlu0 %202
        %s205 = sor.u32 256, 8
        %206 = vbcast.lane.b32.xlu0 %v200, %s205
        %v207 = vpop.permute.xlu0 %206
        %v208 = vlaneseq
        %v209 = vshrl.u32 %v208, 7
        %v210 = vsub.s32 6, %v209
        %v211 = vrot.slane %v138, %v210
        %213 = vbcast.lane.b32.xlu0 %v211, 256
        %v214 = vpop.permute.xlu0 %213
        %s216 = sor.u32 256, 8
        %217 = vbcast.lane.b32.xlu0 %v211, %s216
        %v218 = vpop.permute.xlu0 %217
        %v219 = vlaneseq
        %v220 = vshrl.u32 %v219, 7
        %v221 = vsub.s32 7, %v220
        %v222 = vrot.slane %v138, %v221
        %224 = vbcast.lane.b32.xlu0 %v222, 256
        %v225 = vpop.permute.xlu0 %224
        %s227 = sor.u32 256, 8
        %228 = vbcast.lane.b32.xlu0 %v222, %s227
        %v229 = vpop.permute.xlu0 %228
        %v230 = vlaneseq
        %v231 = vshrl.u32 %v230, 7
        %v232 = vsub.s32 0, %v231
        %v233 = vrot.slane %v139, %v232
        %235 = vbcast.lane.b32.xlu0 %v233, 256
        %v236 = vpop.permute.xlu0 %235
        %s238 = sor.u32 256, 8
        %239 = vbcast.lane.b32.xlu0 %v233, %s238
        %v240 = vpop.permute.xlu0 %239
        %v241 = vlaneseq
        %v242 = vshrl.u32 %v241, 7
        %v243 = vsub.s32 1, %v242
        %v244 = vrot.slane %v139, %v243
        %246 = vbcast.lane.b32.xlu0 %v244, 256
        %v247 = vpop.permute.xlu0 %246
        %s249 = sor.u32 256, 8
        %250 = vbcast.lane.b32.xlu0 %v244, %s249
        %v251 = vpop.permute.xlu0 %250
        %v252 = vlaneseq
        %v253 = vshrl.u32 %v252, 7
        %v254 = vsub.s32 2, %v253
        %v255 = vrot.slane %v139, %v254
        %257 = vbcast.lane.b32.xlu0 %v255, 256
        %v258 = vpop.permute.xlu0 %257
        %s260 = sor.u32 256, 8
        %261 = vbcast.lane.b32.xlu0 %v255, %s260
        %v262 = vpop.permute.xlu0 %261
        %v263 = vlaneseq
        %v264 = vshrl.u32 %v263, 7
        %v265 = vsub.s32 3, %v264
        %v266 = vrot.slane %v139, %v265
        %268 = vbcast.lane.b32.xlu0 %v266, 256
        %v269 = vpop.permute.xlu0 %268
        %s271 = sor.u32 256, 8
        %272 = vbcast.lane.b32.xlu0 %v266, %s271
        %v273 = vpop.permute.xlu0 %272
        %v274 = vlaneseq
        %v275 = vshrl.u32 %v274, 7
        %v276 = vsub.s32 4, %v275
        %v277 = vrot.slane %v139, %v276
        %279 = vbcast.lane.b32.xlu0 %v277, 256
        %v280 = vpop.permute.xlu0 %279
        %s282 = sor.u32 256, 8
        %283 = vbcast.lane.b32.xlu0 %v277, %s282
        %v284 = vpop.permute.xlu0 %283
        %v285 = vlaneseq
        %v286 = vshrl.u32 %v285, 7
        %v287 = vsub.s32 5, %v286
        %v288 = vrot.slane %v139, %v287
        %290 = vbcast.lane.b32.xlu0 %v288, 256
        %v291 = vpop.permute.xlu0 %290
        %s293 = sor.u32 256, 8
        %294 = vbcast.lane.b32.xlu0 %v288, %s293
        %v295 = vpop.permute.xlu0 %294
        %v296 = vlaneseq
        %v297 = vshrl.u32 %v296, 7
        %v298 = vsub.s32 6, %v297
        %v299 = vrot.slane %v139, %v298
        %301 = vbcast.lane.b32.xlu0 %v299, 256
        %v302 = vpop.permute.xlu0 %301
        %s304 = sor.u32 256, 8
        %305 = vbcast.lane.b32.xlu0 %v299, %s304
        %v306 = vpop.permute.xlu0 %305
        %v307 = vlaneseq
        %v308 = vshrl.u32 %v307, 7
        %v309 = vsub.s32 7, %v308
        %v310 = vrot.slane %v139, %v309
        %312 = vbcast.lane.b32.xlu0 %v310, 256
        %v313 = vpop.permute.xlu0 %312
        %s315 = sor.u32 256, 8
        %316 = vbcast.lane.b32.xlu0 %v310, %s315
        %v317 = vpop.permute.xlu0 %316
        %v318 = vlaneseq
        %v319 = vshrl.u32 %v318, 7
        %v320 = vsub.s32 0, %v319
        %v321 = vrot.slane %v140, %v320
        %323 = vbcast.lane.b32.xlu0 %v321, 256
        %v324 = vpop.permute.xlu0 %323
        %s326 = sor.u32 256, 8
        %327 = vbcast.lane.b32.xlu0 %v321, %s326
        %v328 = vpop.permute.xlu0 %327
        %v329 = vlaneseq
        %v330 = vshrl.u32 %v329, 7
        %v331 = vsub.s32 1, %v330
        %v332 = vrot.slane %v140, %v331
        %334 = vbcast.lane.b32.xlu0 %v332, 256
        %v335 = vpop.permute.xlu0 %334
        %s337 = sor.u32 256, 8
        %338 = vbcast.lane.b32.xlu0 %v332, %s337
        %v339 = vpop.permute.xlu0 %338
        %v340 = vlaneseq
        %v341 = vshrl.u32 %v340, 7
        %v342 = vsub.s32 2, %v341
        %v343 = vrot.slane %v140, %v342
        %345 = vbcast.lane.b32.xlu0 %v343, 256
        %v346 = vpop.permute.xlu0 %345
        %s348 = sor.u32 256, 8
        %349 = vbcast.lane.b32.xlu0 %v343, %s348
        %v350 = vpop.permute.xlu0 %349
        %v351 = vlaneseq
        %v352 = vshrl.u32 %v351, 7
        %v353 = vsub.s32 3, %v352
        %v354 = vrot.slane %v140, %v353
        %356 = vbcast.lane.b32.xlu0 %v354, 256
        %v357 = vpop.permute.xlu0 %356
        %s359 = sor.u32 256, 8
        %360 = vbcast.lane.b32.xlu0 %v354, %s359
        %v361 = vpop.permute.xlu0 %360
        %v362 = vlaneseq
        %v363 = vshrl.u32 %v362, 7
        %v364 = vsub.s32 4, %v363
        %v365 = vrot.slane %v140, %v364
        %367 = vbcast.lane.b32.xlu0 %v365, 256
        %v368 = vpop.permute.xlu0 %367
        %s370 = sor.u32 256, 8
        %371 = vbcast.lane.b32.xlu0 %v365, %s370
        %v372 = vpop.permute.xlu0 %371
        %v373 = vlaneseq
        %v374 = vshrl.u32 %v373, 7
        %v375 = vsub.s32 5, %v374
        %v376 = vrot.slane %v140, %v375
        %378 = vbcast.lane.b32.xlu0 %v376, 256
        %v379 = vpop.permute.xlu0 %378
        %s381 = sor.u32 256, 8
        %382 = vbcast.lane.b32.xlu0 %v376, %s381
        %v383 = vpop.permute.xlu0 %382
        %v384 = vlaneseq
        %v385 = vshrl.u32 %v384, 7
        %v386 = vsub.s32 6, %v385
        %v387 = vrot.slane %v140, %v386
        %389 = vbcast.lane.b32.xlu0 %v387, 256
        %v390 = vpop.permute.xlu0 %389
        %s392 = sor.u32 256, 8
        %393 = vbcast.lane.b32.xlu0 %v387, %s392
        %v394 = vpop.permute.xlu0 %393
        %v395 = vlaneseq
        %v396 = vshrl.u32 %v395, 7
        %v397 = vsub.s32 7, %v396
        %v398 = vrot.slane %v140, %v397
        %400 = vbcast.lane.b32.xlu0 %v398, 256
        %v401 = vpop.permute.xlu0 %400
        %s403 = sor.u32 256, 8
        %404 = vbcast.lane.b32.xlu0 %v398, %s403
        %v405 = vpop.permute.xlu0 %404
        %v406 = vlaneseq
        %v407 = vshrl.u32 %v406, 7
        %v408 = vsub.s32 0, %v407
        %v409 = vrot.slane %v141, %v408
        %411 = vbcast.lane.b32.xlu0 %v409, 256
        %v412 = vpop.permute.xlu0 %411
        %s414 = sor.u32 256, 8
        %415 = vbcast.lane.b32.xlu0 %v409, %s414
        %v416 = vpop.permute.xlu0 %415
        %v417 = vlaneseq
        %v418 = vshrl.u32 %v417, 7
        %v419 = vsub.s32 1, %v418
        %v420 = vrot.slane %v141, %v419
        %422 = vbcast.lane.b32.xlu0 %v420, 256
        %v423 = vpop.permute.xlu0 %422
        %s425 = sor.u32 256, 8
        %426 = vbcast.lane.b32.xlu0 %v420, %s425
        %v427 = vpop.permute.xlu0 %426
        %v428 = vlaneseq
        %v429 = vshrl.u32 %v428, 7
        %v430 = vsub.s32 2, %v429
        %v431 = vrot.slane %v141, %v430
        %433 = vbcast.lane.b32.xlu0 %v431, 256
        %v434 = vpop.permute.xlu0 %433
        %s436 = sor.u32 256, 8
        %437 = vbcast.lane.b32.xlu0 %v431, %s436
        %v438 = vpop.permute.xlu0 %437
        %v439 = vlaneseq
        %v440 = vshrl.u32 %v439, 7
        %v441 = vsub.s32 3, %v440
        %v442 = vrot.slane %v141, %v441
        %444 = vbcast.lane.b32.xlu0 %v442, 256
        %v445 = vpop.permute.xlu0 %444
        %s447 = sor.u32 256, 8
        %448 = vbcast.lane.b32.xlu0 %v442, %s447
        %v449 = vpop.permute.xlu0 %448
        %v450 = vlaneseq
        %v451 = vshrl.u32 %v450, 7
        %v452 = vsub.s32 4, %v451
        %v453 = vrot.slane %v141, %v452
        %455 = vbcast.lane.b32.xlu0 %v453, 256
        %v456 = vpop.permute.xlu0 %455
        %s458 = sor.u32 256, 8
        %459 = vbcast.lane.b32.xlu0 %v453, %s458
        %v460 = vpop.permute.xlu0 %459
        %v461 = vlaneseq
        %v462 = vshrl.u32 %v461, 7
        %v463 = vsub.s32 5, %v462
        %v464 = vrot.slane %v141, %v463
        %466 = vbcast.lane.b32.xlu0 %v464, 256
        %v467 = vpop.permute.xlu0 %466
        %s469 = sor.u32 256, 8
        %470 = vbcast.lane.b32.xlu0 %v464, %s469
        %v471 = vpop.permute.xlu0 %470
        %v472 = vlaneseq
        %v473 = vshrl.u32 %v472, 7
        %v474 = vsub.s32 6, %v473
        %v475 = vrot.slane %v141, %v474
        %477 = vbcast.lane.b32.xlu0 %v475, 256
        %v478 = vpop.permute.xlu0 %477
        %s480 = sor.u32 256, 8
        %481 = vbcast.lane.b32.xlu0 %v475, %s480
        %v482 = vpop.permute.xlu0 %481
        %v483 = vlaneseq
        %v484 = vshrl.u32 %v483, 7
        %v485 = vsub.s32 7, %v484
        %v486 = vrot.slane %v141, %v485
        %488 = vbcast.lane.b32.xlu0 %v486, 256
        %v489 = vpop.permute.xlu0 %488
        %s491 = sor.u32 256, 8
        %492 = vbcast.lane.b32.xlu0 %v486, %s491
        %v493 = vpop.permute.xlu0 %492
        %v494 = vcombine.low %v148, %v170
        %v495 = vcombine.high %v148, %v170
        %v497 = vunpack.c.l.s4 1983009808
        %v498 = vunpack.c.0.s8 %v497
        %v499 = vlaneseq
        %v500 = vshrl.u32 %v499, 7
        %v501 = vsub.s32 %v498, %v500
        %v502 = vrot.slane %v494, %v501
        %v504 = vunpack.c.l.s4 1983009808
        %v505 = vunpack.c.0.s8 %v504
        %v506 = vlaneseq
        %v507 = vshrl.u32 %v506, 7
        %v508 = vsub.s32 %v505, %v507
        %v509 = vrot.slane %v495, %v508
        %v510 = vcombine.low %v159, %v181
        %v511 = vcombine.high %v159, %v181
        %v513 = vunpack.c.l.s4 1983009808
        %v514 = vunpack.c.0.s8 %v513
        %v515 = vlaneseq
        %v516 = vshrl.u32 %v515, 7
        %v517 = vsub.s32 %v514, %v516
        %v518 = vrot.slane %v510, %v517
        %v520 = vunpack.c.l.s4 1983009808
        %v521 = vunpack.c.0.s8 %v520
        %v522 = vlaneseq
        %v523 = vshrl.u32 %v522, 7
        %v524 = vsub.s32 %v521, %v523
        %v525 = vrot.slane %v511, %v524
        %v526 = vcombine.low %v192, %v214
        %v527 = vcombine.high %v192, %v214
        %v529 = vunpack.c.l.s4 1983009808
        %v530 = vunpack.c.0.s8 %v529
        %v531 = vlaneseq
        %v532 = vshrl.u32 %v531, 7
        %v533 = vsub.s32 %v530, %v532
        %v534 = vrot.slane %v526, %v533
        %v536 = vunpack.c.l.s4 1983009808
        %v537 = vunpack.c.0.s8 %v536
        %v538 = vlaneseq
        %v539 = vshrl.u32 %v538, 7
        %v540 = vsub.s32 %v537, %v539
        %v541 = vrot.slane %v527, %v540
        %v542 = vcombine.low %v203, %v225
        %v543 = vcombine.high %v203, %v225
        %v545 = vunpack.c.l.s4 1983009808
        %v546 = vunpack.c.0.s8 %v545
        %v547 = vlaneseq
        %v548 = vshrl.u32 %v547, 7
        %v549 = vsub.s32 %v546, %v548
        %v550 = vrot.slane %v542, %v549
        %v552 = vunpack.c.l.s4 1983009808
        %v553 = vunpack.c.0.s8 %v552
        %v554 = vlaneseq
        %v555 = vshrl.u32 %v554, 7
        %v556 = vsub.s32 %v553, %v555
        %v557 = vrot.slane %v543, %v556
        %v558 = vcombine.low %v502, %v518
        %v559 = vcombine.high %v502, %v518
        %v561 = vunpack.c.l.s4 1934713408
        %v562 = vunpack.c.0.s8 %v561
        %v563 = vlaneseq
        %v564 = vshrl.u32 %v563, 7
        %v565 = vsub.s32 %v562, %v564
        %v566 = vrot.slane %v558, %v565
        %v568 = vunpack.c.l.s4 1934713408
        %v569 = vunpack.c.0.s8 %v568
        %v570 = vlaneseq
        %v571 = vshrl.u32 %v570, 7
        %v572 = vsub.s32 %v569, %v571
        %v573 = vrot.slane %v559, %v572
        %v574 = vcombine.low %v509, %v525
        %v575 = vcombine.high %v509, %v525
        %v577 = vunpack.c.l.s4 1934713408
        %v578 = vunpack.c.0.s8 %v577
        %v579 = vlaneseq
        %v580 = vshrl.u32 %v579, 7
        %v581 = vsub.s32 %v578, %v580
        %v582 = vrot.slane %v574, %v581
        %v584 = vunpack.c.l.s4 1934713408
        %v585 = vunpack.c.0.s8 %v584
        %v586 = vlaneseq
        %v587 = vshrl.u32 %v586, 7
        %v588 = vsub.s32 %v585, %v587
        %v589 = vrot.slane %v575, %v588
        %v590 = vcombine.low %v534, %v550
        %v591 = vcombine.high %v534, %v550
        %v593 = vunpack.c.l.s4 1934713408
        %v594 = vunpack.c.0.s8 %v593
        %v595 = vlaneseq
        %v596 = vshrl.u32 %v595, 7
        %v597 = vsub.s32 %v594, %v596
        %v598 = vrot.slane %v590, %v597
        %v600 = vunpack.c.l.s4 1934713408
        %v601 = vunpack.c.0.s8 %v600
        %v602 = vlaneseq
        %v603 = vshrl.u32 %v602, 7
        %v604 = vsub.s32 %v601, %v603
        %v605 = vrot.slane %v591, %v604
        %v606 = vcombine.low %v541, %v557
        %v607 = vcombine.high %v541, %v557
        %v609 = vunpack.c.l.s4 1934713408
        %v610 = vunpack.c.0.s8 %v609
        %v611 = vlaneseq
        %v612 = vshrl.u32 %v611, 7
        %v613 = vsub.s32 %v610, %v612
        %v614 = vrot.slane %v606, %v613
        %v616 = vunpack.c.l.s4 1934713408
        %v617 = vunpack.c.0.s8 %v616
        %v618 = vlaneseq
        %v619 = vshrl.u32 %v618, 7
        %v620 = vsub.s32 %v617, %v619
        %v621 = vrot.slane %v607, %v620
        %v622 = vcombine.low %v566, %v598
        %v623 = vcombine.high %v566, %v598
        %v624 = vcombine.low %v573, %v605
        %v625 = vcombine.high %v573, %v605
        %v626 = vcombine.low %v582, %v614
        %v627 = vcombine.high %v582, %v614
        %v628 = vcombine.low %v589, %v621
        %v629 = vcombine.high %v589, %v621
        %v630 = vcombine.low %v236, %v258
        %v631 = vcombine.high %v236, %v258
        %v633 = vunpack.c.l.s4 1983009808
        %v634 = vunpack.c.0.s8 %v633
        %v635 = vlaneseq
        %v636 = vshrl.u32 %v635, 7
        %v637 = vsub.s32 %v634, %v636
        %v638 = vrot.slane %v630, %v637
        %v640 = vunpack.c.l.s4 1983009808
        %v641 = vunpack.c.0.s8 %v640
        %v642 = vlaneseq
        %v643 = vshrl.u32 %v642, 7
        %v644 = vsub.s32 %v641, %v643
        %v645 = vrot.slane %v631, %v644
        %v646 = vcombine.low %v247, %v269
        %v647 = vcombine.high %v247, %v269
        %v649 = vunpack.c.l.s4 1983009808
        %v650 = vunpack.c.0.s8 %v649
        %v651 = vlaneseq
        %v652 = vshrl.u32 %v651, 7
        %v653 = vsub.s32 %v650, %v652
        %v654 = vrot.slane %v646, %v653
        %v656 = vunpack.c.l.s4 1983009808
        %v657 = vunpack.c.0.s8 %v656
        %v658 = vlaneseq
        %v659 = vshrl.u32 %v658, 7
        %v660 = vsub.s32 %v657, %v659
        %v661 = vrot.slane %v647, %v660
        %v662 = vcombine.low %v280, %v302
        %v663 = vcombine.high %v280, %v302
        %v665 = vunpack.c.l.s4 1983009808
        %v666 = vunpack.c.0.s8 %v665
        %v667 = vlaneseq
        %v668 = vshrl.u32 %v667, 7
        %v669 = vsub.s32 %v666, %v668
        %v670 = vrot.slane %v662, %v669
        %v672 = vunpack.c.l.s4 1983009808
        %v673 = vunpack.c.0.s8 %v672
        %v674 = vlaneseq
        %v675 = vshrl.u32 %v674, 7
        %v676 = vsub.s32 %v673, %v675
        %v677 = vrot.slane %v663, %v676
        %v678 = vcombine.low %v291, %v313
        %v679 = vcombine.high %v291, %v313
        %v681 = vunpack.c.l.s4 1983009808
        %v682 = vunpack.c.0.s8 %v681
        %v683 = vlaneseq
        %v684 = vshrl.u32 %v683, 7
        %v685 = vsub.s32 %v682, %v684
        %v686 = vrot.slane %v678, %v685
        %v688 = vunpack.c.l.s4 1983009808
        %v689 = vunpack.c.0.s8 %v688
        %v690 = vlaneseq
        %v691 = vshrl.u32 %v690, 7
        %v692 = vsub.s32 %v689, %v691
        %v693 = vrot.slane %v679, %v692
        %v694 = vcombine.low %v638, %v654
        %v695 = vcombine.high %v638, %v654
        %v697 = vunpack.c.l.s4 1934713408
        %v698 = vunpack.c.0.s8 %v697
        %v699 = vlaneseq
        %v700 = vshrl.u32 %v699, 7
        %v701 = vsub.s32 %v698, %v700
        %v702 = vrot.slane %v694, %v701
        %v704 = vunpack.c.l.s4 1934713408
        %v705 = vunpack.c.0.s8 %v704
        %v706 = vlaneseq
        %v707 = vshrl.u32 %v706, 7
        %v708 = vsub.s32 %v705, %v707
        %v709 = vrot.slane %v695, %v708
        %v710 = vcombine.low %v645, %v661
        %v711 = vcombine.high %v645, %v661
        %v713 = vunpack.c.l.s4 1934713408
        %v714 = vunpack.c.0.s8 %v713
        %v715 = vlaneseq
        %v716 = vshrl.u32 %v715, 7
        %v717 = vsub.s32 %v714, %v716
        %v718 = vrot.slane %v710, %v717
        %v720 = vunpack.c.l.s4 1934713408
        %v721 = vunpack.c.0.s8 %v720
        %v722 = vlaneseq
        %v723 = vshrl.u32 %v722, 7
        %v724 = vsub.s32 %v721, %v723
        %v725 = vrot.slane %v711, %v724
        %v726 = vcombine.low %v670, %v686
        %v727 = vcombine.high %v670, %v686
        %v729 = vunpack.c.l.s4 1934713408
        %v730 = vunpack.c.0.s8 %v729
        %v731 = vlaneseq
        %v732 = vshrl.u32 %v731, 7
        %v733 = vsub.s32 %v730, %v732
        %v734 = vrot.slane %v726, %v733
        %v736 = vunpack.c.l.s4 1934713408
        %v737 = vunpack.c.0.s8 %v736
        %v738 = vlaneseq
        %v739 = vshrl.u32 %v738, 7
        %v740 = vsub.s32 %v737, %v739
        %v741 = vrot.slane %v727, %v740
        %v742 = vcombine.low %v677, %v693
        %v743 = vcombine.high %v677, %v693
        %v745 = vunpack.c.l.s4 1934713408
        %v746 = vunpack.c.0.s8 %v745
        %v747 = vlaneseq
        %v748 = vshrl.u32 %v747, 7
        %v749 = vsub.s32 %v746, %v748
        %v750 = vrot.slane %v742, %v749
        %v752 = vunpack.c.l.s4 1934713408
        %v753 = vunpack.c.0.s8 %v752
        %v754 = vlaneseq
        %v755 = vshrl.u32 %v754, 7
        %v756 = vsub.s32 %v753, %v755
        %v757 = vrot.slane %v743, %v756
        %v758 = vcombine.low %v702, %v734
        %v759 = vcombine.high %v702, %v734
        %v760 = vcombine.low %v709, %v741
        %v761 = vcombine.high %v709, %v741
        %v762 = vcombine.low %v718, %v750
        %v763 = vcombine.high %v718, %v750
        %v764 = vcombine.low %v725, %v757
        %v765 = vcombine.high %v725, %v757
        %v766 = vcombine.low %v152, %v174
        %v767 = vcombine.high %v152, %v174
        %v769 = vunpack.c.l.s4 1983009808
        %v770 = vunpack.c.0.s8 %v769
        %v771 = vlaneseq
        %v772 = vshrl.u32 %v771, 7
        %v773 = vsub.s32 %v770, %v772
        %v774 = vrot.slane %v766, %v773
        %v776 = vunpack.c.l.s4 1983009808
        %v777 = vunpack.c.0.s8 %v776
        %v778 = vlaneseq
        %v779 = vshrl.u32 %v778, 7
        %v780 = vsub.s32 %v777, %v779
        %v781 = vrot.slane %v767, %v780
        %v782 = vcombine.low %v163, %v185
        %v783 = vcombine.high %v163, %v185
        %v785 = vunpack.c.l.s4 1983009808
        %v786 = vunpack.c.0.s8 %v785
        %v787 = vlaneseq
        %v788 = vshrl.u32 %v787, 7
        %v789 = vsub.s32 %v786, %v788
        %v790 = vrot.slane %v782, %v789
        %v792 = vunpack.c.l.s4 1983009808
        %v793 = vunpack.c.0.s8 %v792
        %v794 = vlaneseq
        %v795 = vshrl.u32 %v794, 7
        %v796 = vsub.s32 %v793, %v795
        %v797 = vrot.slane %v783, %v796
        %v798 = vcombine.low %v196, %v218
        %v799 = vcombine.high %v196, %v218
        %v801 = vunpack.c.l.s4 1983009808
        %v802 = vunpack.c.0.s8 %v801
        %v803 = vlaneseq
        %v804 = vshrl.u32 %v803, 7
        %v805 = vsub.s32 %v802, %v804
        %v806 = vrot.slane %v798, %v805
        %v808 = vunpack.c.l.s4 1983009808
        %v809 = vunpack.c.0.s8 %v808
        %v810 = vlaneseq
        %v811 = vshrl.u32 %v810, 7
        %v812 = vsub.s32 %v809, %v811
        %v813 = vrot.slane %v799, %v812
        %v814 = vcombine.low %v207, %v229
        %v815 = vcombine.high %v207, %v229
        %v817 = vunpack.c.l.s4 1983009808
        %v818 = vunpack.c.0.s8 %v817
        %v819 = vlaneseq
        %v820 = vshrl.u32 %v819, 7
        %v821 = vsub.s32 %v818, %v820
        %v822 = vrot.slane %v814, %v821
        %v824 = vunpack.c.l.s4 1983009808
        %v825 = vunpack.c.0.s8 %v824
        %v826 = vlaneseq
        %v827 = vshrl.u32 %v826, 7
        %v828 = vsub.s32 %v825, %v827
        %v829 = vrot.slane %v815, %v828
        %v830 = vcombine.low %v774, %v790
        %v831 = vcombine.high %v774, %v790
        %v833 = vunpack.c.l.s4 1934713408
        %v834 = vunpack.c.0.s8 %v833
        %v835 = vlaneseq
        %v836 = vshrl.u32 %v835, 7
        %v837 = vsub.s32 %v834, %v836
        %v838 = vrot.slane %v830, %v837
        %v840 = vunpack.c.l.s4 1934713408
        %v841 = vunpack.c.0.s8 %v840
        %v842 = vlaneseq
        %v843 = vshrl.u32 %v842, 7
        %v844 = vsub.s32 %v841, %v843
        %v845 = vrot.slane %v831, %v844
        %v846 = vcombine.low %v781, %v797
        %v847 = vcombine.high %v781, %v797
        %v849 = vunpack.c.l.s4 1934713408
        %v850 = vunpack.c.0.s8 %v849
        %v851 = vlaneseq
        %v852 = vshrl.u32 %v851, 7
        %v853 = vsub.s32 %v850, %v852
        %v854 = vrot.slane %v846, %v853
        %v856 = vunpack.c.l.s4 1934713408
        %v857 = vunpack.c.0.s8 %v856
        %v858 = vlaneseq
        %v859 = vshrl.u32 %v858, 7
        %v860 = vsub.s32 %v857, %v859
        %v861 = vrot.slane %v847, %v860
        %v862 = vcombine.low %v806, %v822
        %v863 = vcombine.high %v806, %v822
        %v865 = vunpack.c.l.s4 1934713408
        %v866 = vunpack.c.0.s8 %v865
        %v867 = vlaneseq
        %v868 = vshrl.u32 %v867, 7
        %v869 = vsub.s32 %v866, %v868
        %v870 = vrot.slane %v862, %v869
        %v872 = vunpack.c.l.s4 1934713408
        %v873 = vunpack.c.0.s8 %v872
        %v874 = vlaneseq
        %v875 = vshrl.u32 %v874, 7
        %v876 = vsub.s32 %v873, %v875
        %v877 = vrot.slane %v863, %v876
        %v878 = vcombine.low %v813, %v829
        %v879 = vcombine.high %v813, %v829
        %v881 = vunpack.c.l.s4 1934713408
        %v882 = vunpack.c.0.s8 %v881
        %v883 = vlaneseq
        %v884 = vshrl.u32 %v883, 7
        %v885 = vsub.s32 %v882, %v884
        %v886 = vrot.slane %v878, %v885
        %v888 = vunpack.c.l.s4 1934713408
        %v889 = vunpack.c.0.s8 %v888
        %v890 = vlaneseq
        %v891 = vshrl.u32 %v890, 7
        %v892 = vsub.s32 %v889, %v891
        %v893 = vrot.slane %v879, %v892
        %v894 = vcombine.low %v838, %v870
        %v895 = vcombine.high %v838, %v870
        %v896 = vcombine.low %v845, %v877
        %v897 = vcombine.high %v845, %v877
        %v898 = vcombine.low %v854, %v886
        %v899 = vcombine.high %v854, %v886
        %v900 = vcombine.low %v861, %v893
        %v901 = vcombine.high %v861, %v893
        %v902 = vcombine.low %v240, %v262
        %v903 = vcombine.high %v240, %v262
        %v905 = vunpack.c.l.s4 1983009808
        %v906 = vunpack.c.0.s8 %v905
        %v907 = vlaneseq
        %v908 = vshrl.u32 %v907, 7
        %v909 = vsub.s32 %v906, %v908
        %v910 = vrot.slane %v902, %v909
        %v912 = vunpack.c.l.s4 1983009808
        %v913 = vunpack.c.0.s8 %v912
        %v914 = vlaneseq
        %v915 = vshrl.u32 %v914, 7
        %v916 = vsub.s32 %v913, %v915
        %v917 = vrot.slane %v903, %v916
        %v918 = vcombine.low %v251, %v273
        %v919 = vcombine.high %v251, %v273
        %v921 = vunpack.c.l.s4 1983009808
        %v922 = vunpack.c.0.s8 %v921
        %v923 = vlaneseq
        %v924 = vshrl.u32 %v923, 7
        %v925 = vsub.s32 %v922, %v924
        %v926 = vrot.slane %v918, %v925
        %v928 = vunpack.c.l.s4 1983009808
        %v929 = vunpack.c.0.s8 %v928
        %v930 = vlaneseq
        %v931 = vshrl.u32 %v930, 7
        %v932 = vsub.s32 %v929, %v931
        %v933 = vrot.slane %v919, %v932
        %v934 = vcombine.low %v284, %v306
        %v935 = vcombine.high %v284, %v306
        %v937 = vunpack.c.l.s4 1983009808
        %v938 = vunpack.c.0.s8 %v937
        %v939 = vlaneseq
        %v940 = vshrl.u32 %v939, 7
        %v941 = vsub.s32 %v938, %v940
        %v942 = vrot.slane %v934, %v941
        %v944 = vunpack.c.l.s4 1983009808
        %v945 = vunpack.c.0.s8 %v944
        %v946 = vlaneseq
        %v947 = vshrl.u32 %v946, 7
        %v948 = vsub.s32 %v945, %v947
        %v949 = vrot.slane %v935, %v948
        %v950 = vcombine.low %v295, %v317
        %v951 = vcombine.high %v295, %v317
        %v953 = vunpack.c.l.s4 1983009808
        %v954 = vunpack.c.0.s8 %v953
        %v955 = vlaneseq
        %v956 = vshrl.u32 %v955, 7
        %v957 = vsub.s32 %v954, %v956
        %v958 = vrot.slane %v950, %v957
        %v960 = vunpack.c.l.s4 1983009808
        %v961 = vunpack.c.0.s8 %v960
        %v962 = vlaneseq
        %v963 = vshrl.u32 %v962, 7
        %v964 = vsub.s32 %v961, %v963
        %v965 = vrot.slane %v951, %v964
        %v966 = vcombine.low %v910, %v926
        %v967 = vcombine.high %v910, %v926
        %v969 = vunpack.c.l.s4 1934713408
        %v970 = vunpack.c.0.s8 %v969
        %v971 = vlaneseq
        %v972 = vshrl.u32 %v971, 7
        %v973 = vsub.s32 %v970, %v972
        %v974 = vrot.slane %v966, %v973
        %v976 = vunpack.c.l.s4 1934713408
        %v977 = vunpack.c.0.s8 %v976
        %v978 = vlaneseq
        %v979 = vshrl.u32 %v978, 7
        %v980 = vsub.s32 %v977, %v979
        %v981 = vrot.slane %v967, %v980
        %v982 = vcombine.low %v917, %v933
        %v983 = vcombine.high %v917, %v933
        %v985 = vunpack.c.l.s4 1934713408
        %v986 = vunpack.c.0.s8 %v985
        %v987 = vlaneseq
        %v988 = vshrl.u32 %v987, 7
        %v989 = vsub.s32 %v986, %v988
        %v990 = vrot.slane %v982, %v989
        %v992 = vunpack.c.l.s4 1934713408
        %v993 = vunpack.c.0.s8 %v992
        %v994 = vlaneseq
        %v995 = vshrl.u32 %v994, 7
        %v996 = vsub.s32 %v993, %v995
        %v997 = vrot.slane %v983, %v996
        %v998 = vcombine.low %v942, %v958
        %v999 = vcombine.high %v942, %v958
        %v1001 = vunpack.c.l.s4 1934713408
        %v1002 = vunpack.c.0.s8 %v1001
        %v1003 = vlaneseq
        %v1004 = vshrl.u32 %v1003, 7
        %v1005 = vsub.s32 %v1002, %v1004
        %v1006 = vrot.slane %v998, %v1005
        %v1008 = vunpack.c.l.s4 1934713408
        %v1009 = vunpack.c.0.s8 %v1008
        %v1010 = vlaneseq
        %v1011 = vshrl.u32 %v1010, 7
        %v1012 = vsub.s32 %v1009, %v1011
        %v1013 = vrot.slane %v999, %v1012
        %v1014 = vcombine.low %v949, %v965
        %v1015 = vcombine.high %v949, %v965
        %v1017 = vunpack.c.l.s4 1934713408
        %v1018 = vunpack.c.0.s8 %v1017
        %v1019 = vlaneseq
        %v1020 = vshrl.u32 %v1019, 7
        %v1021 = vsub.s32 %v1018, %v1020
        %v1022 = vrot.slane %v1014, %v1021
        %v1024 = vunpack.c.l.s4 1934713408
        %v1025 = vunpack.c.0.s8 %v1024
        %v1026 = vlaneseq
        %v1027 = vshrl.u32 %v1026, 7
        %v1028 = vsub.s32 %v1025, %v1027
        %v1029 = vrot.slane %v1015, %v1028
        %v1030 = vcombine.low %v974, %v1006
        %v1031 = vcombine.high %v974, %v1006
        %v1032 = vcombine.low %v981, %v1013
        %v1033 = vcombine.high %v981, %v1013
        %v1034 = vcombine.low %v990, %v1022
        %v1035 = vcombine.high %v990, %v1022
        %v1036 = vcombine.low %v997, %v1029
        %v1037 = vcombine.high %v997, %v1029
        %v1038 = vcombine.low %v324, %v346
        %v1039 = vcombine.high %v324, %v346
        %v1041 = vunpack.c.l.s4 1983009808
        %v1042 = vunpack.c.0.s8 %v1041
        %v1043 = vlaneseq
        %v1044 = vshrl.u32 %v1043, 7
        %v1045 = vsub.s32 %v1042, %v1044
        %v1046 = vrot.slane %v1038, %v1045
        %v1048 = vunpack.c.l.s4 1983009808
        %v1049 = vunpack.c.0.s8 %v1048
        %v1050 = vlaneseq
        %v1051 = vshrl.u32 %v1050, 7
        %v1052 = vsub.s32 %v1049, %v1051
        %v1053 = vrot.slane %v1039, %v1052
        %v1054 = vcombine.low %v335, %v357
        %v1055 = vcombine.high %v335, %v357
        %v1057 = vunpack.c.l.s4 1983009808
        %v1058 = vunpack.c.0.s8 %v1057
        %v1059 = vlaneseq
        %v1060 = vshrl.u32 %v1059, 7
        %v1061 = vsub.s32 %v1058, %v1060
        %v1062 = vrot.slane %v1054, %v1061
        %v1064 = vunpack.c.l.s4 1983009808
        %v1065 = vunpack.c.0.s8 %v1064
        %v1066 = vlaneseq
        %v1067 = vshrl.u32 %v1066, 7
        %v1068 = vsub.s32 %v1065, %v1067
        %v1069 = vrot.slane %v1055, %v1068
        %v1070 = vcombine.low %v368, %v390
        %v1071 = vcombine.high %v368, %v390
        %v1073 = vunpack.c.l.s4 1983009808
        %v1074 = vunpack.c.0.s8 %v1073
        %v1075 = vlaneseq
        %v1076 = vshrl.u32 %v1075, 7
        %v1077 = vsub.s32 %v1074, %v1076
        %v1078 = vrot.slane %v1070, %v1077
        %v1080 = vunpack.c.l.s4 1983009808
        %v1081 = vunpack.c.0.s8 %v1080
        %v1082 = vlaneseq
        %v1083 = vshrl.u32 %v1082, 7
        %v1084 = vsub.s32 %v1081, %v1083
        %v1085 = vrot.slane %v1071, %v1084
        %v1086 = vcombine.low %v379, %v401
        %v1087 = vcombine.high %v379, %v401
        %v1089 = vunpack.c.l.s4 1983009808
        %v1090 = vunpack.c.0.s8 %v1089
        %v1091 = vlaneseq
        %v1092 = vshrl.u32 %v1091, 7
        %v1093 = vsub.s32 %v1090, %v1092
        %v1094 = vrot.slane %v1086, %v1093
        %v1096 = vunpack.c.l.s4 1983009808
        %v1097 = vunpack.c.0.s8 %v1096
        %v1098 = vlaneseq
        %v1099 = vshrl.u32 %v1098, 7
        %v1100 = vsub.s32 %v1097, %v1099
        %v1101 = vrot.slane %v1087, %v1100
        %v1102 = vcombine.low %v1046, %v1062
        %v1103 = vcombine.high %v1046, %v1062
        %v1105 = vunpack.c.l.s4 1934713408
        %v1106 = vunpack.c.0.s8 %v1105
        %v1107 = vlaneseq
        %v1108 = vshrl.u32 %v1107, 7
        %v1109 = vsub.s32 %v1106, %v1108
        %v1110 = vrot.slane %v1102, %v1109
        %v1112 = vunpack.c.l.s4 1934713408
        %v1113 = vunpack.c.0.s8 %v1112
        %v1114 = vlaneseq
        %v1115 = vshrl.u32 %v1114, 7
        %v1116 = vsub.s32 %v1113, %v1115
        %v1117 = vrot.slane %v1103, %v1116
        %v1118 = vcombine.low %v1053, %v1069
        %v1119 = vcombine.high %v1053, %v1069
        %v1121 = vunpack.c.l.s4 1934713408
        %v1122 = vunpack.c.0.s8 %v1121
        %v1123 = vlaneseq
        %v1124 = vshrl.u32 %v1123, 7
        %v1125 = vsub.s32 %v1122, %v1124
        %v1126 = vrot.slane %v1118, %v1125
        %v1128 = vunpack.c.l.s4 1934713408
        %v1129 = vunpack.c.0.s8 %v1128
        %v1130 = vlaneseq
        %v1131 = vshrl.u32 %v1130, 7
        %v1132 = vsub.s32 %v1129, %v1131
        %v1133 = vrot.slane %v1119, %v1132
        %v1134 = vcombine.low %v1078, %v1094
        %v1135 = vcombine.high %v1078, %v1094
        %v1137 = vunpack.c.l.s4 1934713408
        %v1138 = vunpack.c.0.s8 %v1137
        %v1139 = vlaneseq
        %v1140 = vshrl.u32 %v1139, 7
        %v1141 = vsub.s32 %v1138, %v1140
        %v1142 = vrot.slane %v1134, %v1141
        %v1144 = vunpack.c.l.s4 1934713408
        %v1145 = vunpack.c.0.s8 %v1144
        %v1146 = vlaneseq
        %v1147 = vshrl.u32 %v1146, 7
        %v1148 = vsub.s32 %v1145, %v1147
        %v1149 = vrot.slane %v1135, %v1148
        %v1150 = vcombine.low %v1085, %v1101
        %v1151 = vcombine.high %v1085, %v1101
        %v1153 = vunpack.c.l.s4 1934713408
        %v1154 = vunpack.c.0.s8 %v1153
        %v1155 = vlaneseq
        %v1156 = vshrl.u32 %v1155, 7
        %v1157 = vsub.s32 %v1154, %v1156
        %v1158 = vrot.slane %v1150, %v1157
        %v1160 = vunpack.c.l.s4 1934713408
        %v1161 = vunpack.c.0.s8 %v1160
        %v1162 = vlaneseq
        %v1163 = vshrl.u32 %v1162, 7
        %v1164 = vsub.s32 %v1161, %v1163
        %v1165 = vrot.slane %v1151, %v1164
        %v1166 = vcombine.low %v1110, %v1142
        %v1167 = vcombine.high %v1110, %v1142
        %v1168 = vcombine.low %v1117, %v1149
        %v1169 = vcombine.high %v1117, %v1149
        %v1170 = vcombine.low %v1126, %v1158
        %v1171 = vcombine.high %v1126, %v1158
        %v1172 = vcombine.low %v1133, %v1165
        %v1173 = vcombine.high %v1133, %v1165
        %v1174 = vcombine.low %v412, %v434
        %v1175 = vcombine.high %v412, %v434
        %v1177 = vunpack.c.l.s4 1983009808
        %v1178 = vunpack.c.0.s8 %v1177
        %v1179 = vlaneseq
        %v1180 = vshrl.u32 %v1179, 7
        %v1181 = vsub.s32 %v1178, %v1180
        %v1182 = vrot.slane %v1174, %v1181
        %v1184 = vunpack.c.l.s4 1983009808
        %v1185 = vunpack.c.0.s8 %v1184
        %v1186 = vlaneseq
        %v1187 = vshrl.u32 %v1186, 7
        %v1188 = vsub.s32 %v1185, %v1187
        %v1189 = vrot.slane %v1175, %v1188
        %v1190 = vcombine.low %v423, %v445
        %v1191 = vcombine.high %v423, %v445
        %v1193 = vunpack.c.l.s4 1983009808
        %v1194 = vunpack.c.0.s8 %v1193
        %v1195 = vlaneseq
        %v1196 = vshrl.u32 %v1195, 7
        %v1197 = vsub.s32 %v1194, %v1196
        %v1198 = vrot.slane %v1190, %v1197
        %v1200 = vunpack.c.l.s4 1983009808
        %v1201 = vunpack.c.0.s8 %v1200
        %v1202 = vlaneseq
        %v1203 = vshrl.u32 %v1202, 7
        %v1204 = vsub.s32 %v1201, %v1203
        %v1205 = vrot.slane %v1191, %v1204
        %v1206 = vcombine.low %v456, %v478
        %v1207 = vcombine.high %v456, %v478
        %v1209 = vunpack.c.l.s4 1983009808
        %v1210 = vunpack.c.0.s8 %v1209
        %v1211 = vlaneseq
        %v1212 = vshrl.u32 %v1211, 7
        %v1213 = vsub.s32 %v1210, %v1212
        %v1214 = vrot.slane %v1206, %v1213
        %v1216 = vunpack.c.l.s4 1983009808
        %v1217 = vunpack.c.0.s8 %v1216
        %v1218 = vlaneseq
        %v1219 = vshrl.u32 %v1218, 7
        %v1220 = vsub.s32 %v1217, %v1219
        %v1221 = vrot.slane %v1207, %v1220
        %v1222 = vcombine.low %v467, %v489
        %v1223 = vcombine.high %v467, %v489
        %v1225 = vunpack.c.l.s4 1983009808
        %v1226 = vunpack.c.0.s8 %v1225
        %v1227 = vlaneseq
        %v1228 = vshrl.u32 %v1227, 7
        %v1229 = vsub.s32 %v1226, %v1228
        %v1230 = vrot.slane %v1222, %v1229
        %v1232 = vunpack.c.l.s4 1983009808
        %v1233 = vunpack.c.0.s8 %v1232
        %v1234 = vlaneseq
        %v1235 = vshrl.u32 %v1234, 7
        %v1236 = vsub.s32 %v1233, %v1235
        %v1237 = vrot.slane %v1223, %v1236
        %v1238 = vcombine.low %v1182, %v1198
        %v1239 = vcombine.high %v1182, %v1198
        %v1241 = vunpack.c.l.s4 1934713408
        %v1242 = vunpack.c.0.s8 %v1241
        %v1243 = vlaneseq
        %v1244 = vshrl.u32 %v1243, 7
        %v1245 = vsub.s32 %v1242, %v1244
        %v1246 = vrot.slane %v1238, %v1245
        %v1248 = vunpack.c.l.s4 1934713408
        %v1249 = vunpack.c.0.s8 %v1248
        %v1250 = vlaneseq
        %v1251 = vshrl.u32 %v1250, 7
        %v1252 = vsub.s32 %v1249, %v1251
        %v1253 = vrot.slane %v1239, %v1252
        %v1254 = vcombine.low %v1189, %v1205
        %v1255 = vcombine.high %v1189, %v1205
        %v1257 = vunpack.c.l.s4 1934713408
        %v1258 = vunpack.c.0.s8 %v1257
        %v1259 = vlaneseq
        %v1260 = vshrl.u32 %v1259, 7
        %v1261 = vsub.s32 %v1258, %v1260
        %v1262 = vrot.slane %v1254, %v1261
        %v1264 = vunpack.c.l.s4 1934713408
        %v1265 = vunpack.c.0.s8 %v1264
        %v1266 = vlaneseq
        %v1267 = vshrl.u32 %v1266, 7
        %v1268 = vsub.s32 %v1265, %v1267
        %v1269 = vrot.slane %v1255, %v1268
        %v1270 = vcombine.low %v1214, %v1230
        %v1271 = vcombine.high %v1214, %v1230
        %v1273 = vunpack.c.l.s4 1934713408
        %v1274 = vunpack.c.0.s8 %v1273
        %v1275 = vlaneseq
        %v1276 = vshrl.u32 %v1275, 7
        %v1277 = vsub.s32 %v1274, %v1276
        %v1278 = vrot.slane %v1270, %v1277
        %v1280 = vunpack.c.l.s4 1934713408
        %v1281 = vunpack.c.0.s8 %v1280
        %v1282 = vlaneseq
        %v1283 = vshrl.u32 %v1282, 7
        %v1284 = vsub.s32 %v1281, %v1283
        %v1285 = vrot.slane %v1271, %v1284
        %v1286 = vcombine.low %v1221, %v1237
        %v1287 = vcombine.high %v1221, %v1237
        %v1289 = vunpack.c.l.s4 1934713408
        %v1290 = vunpack.c.0.s8 %v1289
        %v1291 = vlaneseq
        %v1292 = vshrl.u32 %v1291, 7
        %v1293 = vsub.s32 %v1290, %v1292
        %v1294 = vrot.slane %v1286, %v1293
        %v1296 = vunpack.c.l.s4 1934713408
        %v1297 = vunpack.c.0.s8 %v1296
        %v1298 = vlaneseq
        %v1299 = vshrl.u32 %v1298, 7
        %v1300 = vsub.s32 %v1297, %v1299
        %v1301 = vrot.slane %v1287, %v1300
        %v1302 = vcombine.low %v1246, %v1278
        %v1303 = vcombine.high %v1246, %v1278
        %v1304 = vcombine.low %v1253, %v1285
        %v1305 = vcombine.high %v1253, %v1285
        %v1306 = vcombine.low %v1262, %v1294
        %v1307 = vcombine.high %v1262, %v1294
        %v1308 = vcombine.low %v1269, %v1301
        %v1309 = vcombine.high %v1269, %v1301
        %v1310 = vcombine.low %v328, %v350
        %v1311 = vcombine.high %v328, %v350
        %v1313 = vunpack.c.l.s4 1983009808
        %v1314 = vunpack.c.0.s8 %v1313
        %v1315 = vlaneseq
        %v1316 = vshrl.u32 %v1315, 7
        %v1317 = vsub.s32 %v1314, %v1316
        %v1318 = vrot.slane %v1310, %v1317
        %v1320 = vunpack.c.l.s4 1983009808
        %v1321 = vunpack.c.0.s8 %v1320
        %v1322 = vlaneseq
        %v1323 = vshrl.u32 %v1322, 7
        %v1324 = vsub.s32 %v1321, %v1323
        %v1325 = vrot.slane %v1311, %v1324
        %v1326 = vcombine.low %v339, %v361
        %v1327 = vcombine.high %v339, %v361
        %v1329 = vunpack.c.l.s4 1983009808
        %v1330 = vunpack.c.0.s8 %v1329
        %v1331 = vlaneseq
        %v1332 = vshrl.u32 %v1331, 7
        %v1333 = vsub.s32 %v1330, %v1332
        %v1334 = vrot.slane %v1326, %v1333
        %v1336 = vunpack.c.l.s4 1983009808
        %v1337 = vunpack.c.0.s8 %v1336
        %v1338 = vlaneseq
        %v1339 = vshrl.u32 %v1338, 7
        %v1340 = vsub.s32 %v1337, %v1339
        %v1341 = vrot.slane %v1327, %v1340
        %v1342 = vcombine.low %v372, %v394
        %v1343 = vcombine.high %v372, %v394
        %v1345 = vunpack.c.l.s4 1983009808
        %v1346 = vunpack.c.0.s8 %v1345
        %v1347 = vlaneseq
        %v1348 = vshrl.u32 %v1347, 7
        %v1349 = vsub.s32 %v1346, %v1348
        %v1350 = vrot.slane %v1342, %v1349
        %v1352 = vunpack.c.l.s4 1983009808
        %v1353 = vunpack.c.0.s8 %v1352
        %v1354 = vlaneseq
        %v1355 = vshrl.u32 %v1354, 7
        %v1356 = vsub.s32 %v1353, %v1355
        %v1357 = vrot.slane %v1343, %v1356
        %v1358 = vcombine.low %v383, %v405
        %v1359 = vcombine.high %v383, %v405
        %v1361 = vunpack.c.l.s4 1983009808
        %v1362 = vunpack.c.0.s8 %v1361
        %v1363 = vlaneseq
        %v1364 = vshrl.u32 %v1363, 7
        %v1365 = vsub.s32 %v1362, %v1364
        %v1366 = vrot.slane %v1358, %v1365
        %v1368 = vunpack.c.l.s4 1983009808
        %v1369 = vunpack.c.0.s8 %v1368
        %v1370 = vlaneseq
        %v1371 = vshrl.u32 %v1370, 7
        %v1372 = vsub.s32 %v1369, %v1371
        %v1373 = vrot.slane %v1359, %v1372
        %v1374 = vcombine.low %v1318, %v1334
        %v1375 = vcombine.high %v1318, %v1334
        %v1377 = vunpack.c.l.s4 1934713408
        %v1378 = vunpack.c.0.s8 %v1377
        %v1379 = vlaneseq
        %v1380 = vshrl.u32 %v1379, 7
        %v1381 = vsub.s32 %v1378, %v1380
        %v1382 = vrot.slane %v1374, %v1381
        %v1384 = vunpack.c.l.s4 1934713408
        %v1385 = vunpack.c.0.s8 %v1384
        %v1386 = vlaneseq
        %v1387 = vshrl.u32 %v1386, 7
        %v1388 = vsub.s32 %v1385, %v1387
        %v1389 = vrot.slane %v1375, %v1388
        %v1390 = vcombine.low %v1325, %v1341
        %v1391 = vcombine.high %v1325, %v1341
        %v1393 = vunpack.c.l.s4 1934713408
        %v1394 = vunpack.c.0.s8 %v1393
        %v1395 = vlaneseq
        %v1396 = vshrl.u32 %v1395, 7
        %v1397 = vsub.s32 %v1394, %v1396
        %v1398 = vrot.slane %v1390, %v1397
        %v1400 = vunpack.c.l.s4 1934713408
        %v1401 = vunpack.c.0.s8 %v1400
        %v1402 = vlaneseq
        %v1403 = vshrl.u32 %v1402, 7
        %v1404 = vsub.s32 %v1401, %v1403
        %v1405 = vrot.slane %v1391, %v1404
        %v1406 = vcombine.low %v1350, %v1366
        %v1407 = vcombine.high %v1350, %v1366
        %v1409 = vunpack.c.l.s4 1934713408
        %v1410 = vunpack.c.0.s8 %v1409
        %v1411 = vlaneseq
        %v1412 = vshrl.u32 %v1411, 7
        %v1413 = vsub.s32 %v1410, %v1412
        %v1414 = vrot.slane %v1406, %v1413
        %v1416 = vunpack.c.l.s4 1934713408
        %v1417 = vunpack.c.0.s8 %v1416
        %v1418 = vlaneseq
        %v1419 = vshrl.u32 %v1418, 7
        %v1420 = vsub.s32 %v1417, %v1419
        %v1421 = vrot.slane %v1407, %v1420
        %v1422 = vcombine.low %v1357, %v1373
        %v1423 = vcombine.high %v1357, %v1373
        %v1425 = vunpack.c.l.s4 1934713408
        %v1426 = vunpack.c.0.s8 %v1425
        %v1427 = vlaneseq
        %v1428 = vshrl.u32 %v1427, 7
        %v1429 = vsub.s32 %v1426, %v1428
        %v1430 = vrot.slane %v1422, %v1429
        %v1432 = vunpack.c.l.s4 1934713408
        %v1433 = vunpack.c.0.s8 %v1432
        %v1434 = vlaneseq
        %v1435 = vshrl.u32 %v1434, 7
        %v1436 = vsub.s32 %v1433, %v1435
        %v1437 = vrot.slane %v1423, %v1436
        %v1438 = vcombine.low %v1382, %v1414
        %v1439 = vcombine.high %v1382, %v1414
        %v1440 = vcombine.low %v1389, %v1421
        %v1441 = vcombine.high %v1389, %v1421
        %v1442 = vcombine.low %v1398, %v1430
        %v1443 = vcombine.high %v1398, %v1430
        %v1444 = vcombine.low %v1405, %v1437
        %v1445 = vcombine.high %v1405, %v1437
        %v1446 = vcombine.low %v416, %v438
        %v1447 = vcombine.high %v416, %v438
        %v1449 = vunpack.c.l.s4 1983009808
        %v1450 = vunpack.c.0.s8 %v1449
        %v1451 = vlaneseq
        %v1452 = vshrl.u32 %v1451, 7
        %v1453 = vsub.s32 %v1450, %v1452
        %v1454 = vrot.slane %v1446, %v1453
        %v1456 = vunpack.c.l.s4 1983009808
        %v1457 = vunpack.c.0.s8 %v1456
        %v1458 = vlaneseq
        %v1459 = vshrl.u32 %v1458, 7
        %v1460 = vsub.s32 %v1457, %v1459
        %v1461 = vrot.slane %v1447, %v1460
        %v1462 = vcombine.low %v427, %v449
        %v1463 = vcombine.high %v427, %v449
        %v1465 = vunpack.c.l.s4 1983009808
        %v1466 = vunpack.c.0.s8 %v1465
        %v1467 = vlaneseq
        %v1468 = vshrl.u32 %v1467, 7
        %v1469 = vsub.s32 %v1466, %v1468
        %v1470 = vrot.slane %v1462, %v1469
        %v1472 = vunpack.c.l.s4 1983009808
        %v1473 = vunpack.c.0.s8 %v1472
        %v1474 = vlaneseq
        %v1475 = vshrl.u32 %v1474, 7
        %v1476 = vsub.s32 %v1473, %v1475
        %v1477 = vrot.slane %v1463, %v1476
        %v1478 = vcombine.low %v460, %v482
        %v1479 = vcombine.high %v460, %v482
        %v1481 = vunpack.c.l.s4 1983009808
        %v1482 = vunpack.c.0.s8 %v1481
        %v1483 = vlaneseq
        %v1484 = vshrl.u32 %v1483, 7
        %v1485 = vsub.s32 %v1482, %v1484
        %v1486 = vrot.slane %v1478, %v1485
        %v1488 = vunpack.c.l.s4 1983009808
        %v1489 = vunpack.c.0.s8 %v1488
        %v1490 = vlaneseq
        %v1491 = vshrl.u32 %v1490, 7
        %v1492 = vsub.s32 %v1489, %v1491
        %v1493 = vrot.slane %v1479, %v1492
        %v1494 = vcombine.low %v471, %v493
        %v1495 = vcombine.high %v471, %v493
        %v1497 = vunpack.c.l.s4 1983009808
        %v1498 = vunpack.c.0.s8 %v1497
        %v1499 = vlaneseq
        %v1500 = vshrl.u32 %v1499, 7
        %v1501 = vsub.s32 %v1498, %v1500
        %v1502 = vrot.slane %v1494, %v1501
        %v1504 = vunpack.c.l.s4 1983009808
        %v1505 = vunpack.c.0.s8 %v1504
        %v1506 = vlaneseq
        %v1507 = vshrl.u32 %v1506, 7
        %v1508 = vsub.s32 %v1505, %v1507
        %v1509 = vrot.slane %v1495, %v1508
        %v1510 = vcombine.low %v1454, %v1470
        %v1511 = vcombine.high %v1454, %v1470
        %v1513 = vunpack.c.l.s4 1934713408
        %v1514 = vunpack.c.0.s8 %v1513
        %v1515 = vlaneseq
        %v1516 = vshrl.u32 %v1515, 7
        %v1517 = vsub.s32 %v1514, %v1516
        %v1518 = vrot.slane %v1510, %v1517
        %v1520 = vunpack.c.l.s4 1934713408
        %v1521 = vunpack.c.0.s8 %v1520
        %v1522 = vlaneseq
        %v1523 = vshrl.u32 %v1522, 7
        %v1524 = vsub.s32 %v1521, %v1523
        %v1525 = vrot.slane %v1511, %v1524
        %v1526 = vcombine.low %v1461, %v1477
        %v1527 = vcombine.high %v1461, %v1477
        %v1529 = vunpack.c.l.s4 1934713408
        %v1530 = vunpack.c.0.s8 %v1529
        %v1531 = vlaneseq
        %v1532 = vshrl.u32 %v1531, 7
        %v1533 = vsub.s32 %v1530, %v1532
        %v1534 = vrot.slane %v1526, %v1533
        %v1536 = vunpack.c.l.s4 1934713408
        %v1537 = vunpack.c.0.s8 %v1536
        %v1538 = vlaneseq
        %v1539 = vshrl.u32 %v1538, 7
        %v1540 = vsub.s32 %v1537, %v1539
        %v1541 = vrot.slane %v1527, %v1540
        %v1542 = vcombine.low %v1486, %v1502
        %v1543 = vcombine.high %v1486, %v1502
        %v1545 = vunpack.c.l.s4 1934713408
        %v1546 = vunpack.c.0.s8 %v1545
        %v1547 = vlaneseq
        %v1548 = vshrl.u32 %v1547, 7
        %v1549 = vsub.s32 %v1546, %v1548
        %v1550 = vrot.slane %v1542, %v1549
        %v1552 = vunpack.c.l.s4 1934713408
        %v1553 = vunpack.c.0.s8 %v1552
        %v1554 = vlaneseq
        %v1555 = vshrl.u32 %v1554, 7
        %v1556 = vsub.s32 %v1553, %v1555
        %v1557 = vrot.slane %v1543, %v1556
        %v1558 = vcombine.low %v1493, %v1509
        %v1559 = vcombine.high %v1493, %v1509
        %v1561 = vunpack.c.l.s4 1934713408
        %v1562 = vunpack.c.0.s8 %v1561
        %v1563 = vlaneseq
        %v1564 = vshrl.u32 %v1563, 7
        %v1565 = vsub.s32 %v1562, %v1564
        %v1566 = vrot.slane %v1558, %v1565
        %v1568 = vunpack.c.l.s4 1934713408
        %v1569 = vunpack.c.0.s8 %v1568
        %v1570 = vlaneseq
        %v1571 = vshrl.u32 %v1570, 7
        %v1572 = vsub.s32 %v1569, %v1571
        %v1573 = vrot.slane %v1559, %v1572
        %v1574 = vcombine.low %v1518, %v1550
        %v1575 = vcombine.high %v1518, %v1550
        %v1576 = vcombine.low %v1525, %v1557
        %v1577 = vcombine.high %v1525, %v1557
        %v1578 = vcombine.low %v1534, %v1566
        %v1579 = vcombine.high %v1534, %v1566
        %v1580 = vcombine.low %v1541, %v1573
        %v1581 = vcombine.high %v1541, %v1573
        %1586 = vrot.lane.b32.xlu0 %v623, 2
        %v1587 = vpop.permute.xlu0 %1586
        %1588 = vrot.lane.b32.xlu0 %v759, 2
        %v1589 = vpop.permute.xlu0 %1588
        %1590 = vrot.lane.b32.xlu0 %v1167, 2
        %v1591 = vpop.permute.xlu0 %1590
        %1592 = vrot.lane.b32.xlu0 %v1303, 2
        %v1593 = vpop.permute.xlu0 %1592
        %1602 = vrot.lane.b32.xlu0 %v624, 4
        %v1603 = vpop.permute.xlu0 %1602
        %1604 = vrot.lane.b32.xlu0 %v760, 4
        %v1605 = vpop.permute.xlu0 %1604
        %1606 = vrot.lane.b32.xlu0 %v1168, 4
        %v1607 = vpop.permute.xlu0 %1606
        %1608 = vrot.lane.b32.xlu0 %v1304, 4
        %v1609 = vpop.permute.xlu0 %1608
        %1618 = vrot.lane.b32.xlu0 %v625, 6
        %v1619 = vpop.permute.xlu0 %1618
        %1620 = vrot.lane.b32.xlu0 %v761, 6
        %v1621 = vpop.permute.xlu0 %1620
        %1622 = vrot.lane.b32.xlu0 %v1169, 6
        %v1623 = vpop.permute.xlu0 %1622
        %1624 = vrot.lane.b32.xlu0 %v1305, 6
        %v1625 = vpop.permute.xlu0 %1624
        %1634 = vrot.lane.b32.xlu0 %v626, 8
        %v1635 = vpop.permute.xlu0 %1634
        %1636 = vrot.lane.b32.xlu0 %v762, 8
        %v1637 = vpop.permute.xlu0 %1636
        %1638 = vrot.lane.b32.xlu0 %v1170, 8
        %v1639 = vpop.permute.xlu0 %1638
        %1640 = vrot.lane.b32.xlu0 %v1306, 8
        %v1641 = vpop.permute.xlu0 %1640
        %1650 = vrot.lane.b32.xlu0 %v627, 10
        %v1651 = vpop.permute.xlu0 %1650
        %1652 = vrot.lane.b32.xlu0 %v763, 10
        %v1653 = vpop.permute.xlu0 %1652
        %1654 = vrot.lane.b32.xlu0 %v1171, 10
        %v1655 = vpop.permute.xlu0 %1654
        %1656 = vrot.lane.b32.xlu0 %v1307, 10
        %v1657 = vpop.permute.xlu0 %1656
        %1666 = vrot.lane.b32.xlu0 %v628, 12
        %v1667 = vpop.permute.xlu0 %1666
        %1668 = vrot.lane.b32.xlu0 %v764, 12
        %v1669 = vpop.permute.xlu0 %1668
        %1670 = vrot.lane.b32.xlu0 %v1172, 12
        %v1671 = vpop.permute.xlu0 %1670
        %1672 = vrot.lane.b32.xlu0 %v1308, 12
        %v1673 = vpop.permute.xlu0 %1672
        %1682 = vrot.lane.b32.xlu0 %v629, 14
        %v1683 = vpop.permute.xlu0 %1682
        %1684 = vrot.lane.b32.xlu0 %v765, 14
        %v1685 = vpop.permute.xlu0 %1684
        %1686 = vrot.lane.b32.xlu0 %v1173, 14
        %v1687 = vpop.permute.xlu0 %1686
        %1688 = vrot.lane.b32.xlu0 %v1309, 14
        %v1689 = vpop.permute.xlu0 %1688
        %1698 = vrot.lane.b32.xlu0 %v894, 16
        %v1699 = vpop.permute.xlu0 %1698
        %1700 = vrot.lane.b32.xlu0 %v1030, 16
        %v1701 = vpop.permute.xlu0 %1700
        %1702 = vrot.lane.b32.xlu0 %v1438, 16
        %v1703 = vpop.permute.xlu0 %1702
        %1704 = vrot.lane.b32.xlu0 %v1574, 16
        %v1705 = vpop.permute.xlu0 %1704
        %1714 = vrot.lane.b32.xlu0 %v895, 18
        %v1715 = vpop.permute.xlu0 %1714
        %1716 = vrot.lane.b32.xlu0 %v1031, 18
        %v1717 = vpop.permute.xlu0 %1716
        %1718 = vrot.lane.b32.xlu0 %v1439, 18
        %v1719 = vpop.permute.xlu0 %1718
        %1720 = vrot.lane.b32.xlu0 %v1575, 18
        %v1721 = vpop.permute.xlu0 %1720
        %1730 = vrot.lane.b32.xlu0 %v896, 20
        %v1731 = vpop.permute.xlu0 %1730
        %1732 = vrot.lane.b32.xlu0 %v1032, 20
        %v1733 = vpop.permute.xlu0 %1732
        %1734 = vrot.lane.b32.xlu0 %v1440, 20
        %v1735 = vpop.permute.xlu0 %1734
        %1736 = vrot.lane.b32.xlu0 %v1576, 20
        %v1737 = vpop.permute.xlu0 %1736
        %1746 = vrot.lane.b32.xlu0 %v897, 22
        %v1747 = vpop.permute.xlu0 %1746
        %1748 = vrot.lane.b32.xlu0 %v1033, 22
        %v1749 = vpop.permute.xlu0 %1748
        %1750 = vrot.lane.b32.xlu0 %v1441, 22
        %v1751 = vpop.permute.xlu0 %1750
        %1752 = vrot.lane.b32.xlu0 %v1577, 22
        %v1753 = vpop.permute.xlu0 %1752
        %1762 = vrot.lane.b32.xlu0 %v898, 24
        %v1763 = vpop.permute.xlu0 %1762
        %1764 = vrot.lane.b32.xlu0 %v1034, 24
        %v1765 = vpop.permute.xlu0 %1764
        %1766 = vrot.lane.b32.xlu0 %v1442, 24
        %v1767 = vpop.permute.xlu0 %1766
        %1768 = vrot.lane.b32.xlu0 %v1578, 24
        %v1769 = vpop.permute.xlu0 %1768
        %1778 = vrot.lane.b32.xlu0 %v899, 26
        %v1779 = vpop.permute.xlu0 %1778
        %1780 = vrot.lane.b32.xlu0 %v1035, 26
        %v1781 = vpop.permute.xlu0 %1780
        %1782 = vrot.lane.b32.xlu0 %v1443, 26
        %v1783 = vpop.permute.xlu0 %1782
        %1784 = vrot.lane.b32.xlu0 %v1579, 26
        %v1785 = vpop.permute.xlu0 %1784
        %1794 = vrot.lane.b32.xlu0 %v900, 28
        %v1795 = vpop.permute.xlu0 %1794
        %1796 = vrot.lane.b32.xlu0 %v1036, 28
        %v1797 = vpop.permute.xlu0 %1796
        %1798 = vrot.lane.b32.xlu0 %v1444, 28
        %v1799 = vpop.permute.xlu0 %1798
        %1800 = vrot.lane.b32.xlu0 %v1580, 28
        %v1801 = vpop.permute.xlu0 %1800
        %1810 = vrot.lane.b32.xlu0 %v901, 30
        %v1811 = vpop.permute.xlu0 %1810
        %1812 = vrot.lane.b32.xlu0 %v1037, 30
        %v1813 = vpop.permute.xlu0 %1812
        %1814 = vrot.lane.b32.xlu0 %v1445, 30
        %v1815 = vpop.permute.xlu0 %1814
        %1816 = vrot.lane.b32.xlu0 %v1581, 30
        %v1817 = vpop.permute.xlu0 %1816
        %vm1822 = vcmask 15360
        %v1823 = vsel %vm1822, %v622, %v1587
        %v1824 = vsel %vm1822, %v758, %v1589
        %v1825 = vsel %vm1822, %v1166, %v1591
        %v1826 = vsel %vm1822, %v1302, %v1593
        %vm1827 = vcmask 31744
        %v1828 = vsel %vm1827, %v1823, %v1603
        %v1829 = vsel %vm1827, %v1824, %v1605
        %v1830 = vsel %vm1827, %v1825, %v1607
        %v1831 = vsel %vm1827, %v1826, %v1609
        %vm1832 = vcmask 48128
        %v1833 = vsel %vm1832, %v1828, %v1619
        %v1834 = vsel %vm1832, %v1829, %v1621
        %v1835 = vsel %vm1832, %v1830, %v1623
        %v1836 = vsel %vm1832, %v1831, %v1625
        %vm1837 = vcmask 64512
        %v1838 = vsel %vm1837, %v1833, %v1635
        %v1839 = vsel %vm1837, %v1834, %v1637
        %v1840 = vsel %vm1837, %v1835, %v1639
        %v1841 = vsel %vm1837, %v1836, %v1641
        %vm1842 = vcmask 80896
        %v1843 = vsel %vm1842, %v1838, %v1651
        %v1844 = vsel %vm1842, %v1839, %v1653
        %v1845 = vsel %vm1842, %v1840, %v1655
        %v1846 = vsel %vm1842, %v1841, %v1657
        %vm1847 = vcmask 97280
        %v1848 = vsel %vm1847, %v1843, %v1667
        %v1849 = vsel %vm1847, %v1844, %v1669
        %v1850 = vsel %vm1847, %v1845, %v1671
        %v1851 = vsel %vm1847, %v1846, %v1673
        %vm1852 = vcmask 113664
        %v1853 = vsel %vm1852, %v1848, %v1683
        %v1854 = vsel %vm1852, %v1849, %v1685
        %v1855 = vsel %vm1852, %v1850, %v1687
        %v1856 = vsel %vm1852, %v1851, %v1689
        %vm1857 = vcmask 130048
        %v1858 = vsel %vm1857, %v1853, %v1699
        %v1859 = vsel %vm1857, %v1854, %v1701
        %v1860 = vsel %vm1857, %v1855, %v1703
        %v1861 = vsel %vm1857, %v1856, %v1705
        %vm1862 = vcmask 146432
        %v1863 = vsel %vm1862, %v1858, %v1715
        %v1864 = vsel %vm1862, %v1859, %v1717
        %v1865 = vsel %vm1862, %v1860, %v1719
        %v1866 = vsel %vm1862, %v1861, %v1721
        %vm1867 = vcmask 162816
        %v1868 = vsel %vm1867, %v1863, %v1731
        %v1869 = vsel %vm1867, %v1864, %v1733
        %v1870 = vsel %vm1867, %v1865, %v1735
        %v1871 = vsel %vm1867, %v1866, %v1737
        %vm1872 = vcmask 179200
        %v1873 = vsel %vm1872, %v1868, %v1747
        %v1874 = vsel %vm1872, %v1869, %v1749
        %v1875 = vsel %vm1872, %v1870, %v1751
        %v1876 = vsel %vm1872, %v1871, %v1753
        %vm1877 = vcmask 195584
        %v1878 = vsel %vm1877, %v1873, %v1763
        %v1879 = vsel %vm1877, %v1874, %v1765
        %v1880 = vsel %vm1877, %v1875, %v1767
        %v1881 = vsel %vm1877, %v1876, %v1769
        %vm1882 = vcmask 211968
        %v1883 = vsel %vm1882, %v1878, %v1779
        %v1884 = vsel %vm1882, %v1879, %v1781
        %v1885 = vsel %vm1882, %v1880, %v1783
        %v1886 = vsel %vm1882, %v1881, %v1785
        %vm1887 = vcmask 228352
        %v1888 = vsel %vm1887, %v1883, %v1795
        %v1889 = vsel %vm1887, %v1884, %v1797
        %v1890 = vsel %vm1887, %v1885, %v1799
        %v1891 = vsel %vm1887, %v1886, %v1801
        %vm1892 = vcmask 244736
        %v1893 = vsel %vm1892, %v1888, %v1811
        %v1894 = vsel %vm1892, %v1889, %v1813
        %v1895 = vsel %vm1892, %v1890, %v1815
        %v1896 = vsel %vm1892, %v1891, %v1817
        %1901 = vrot.lane.b32.xlu0 %v1893, 32
        %v1902 = vpop.permute.xlu0 %1901
        %1903 = vrot.lane.b32.xlu0 %v1894, 32
        %v1904 = vpop.permute.xlu0 %1903
        %1905 = vrot.lane.b32.xlu0 %v1895, 32
        %v1906 = vpop.permute.xlu0 %1905
        %1907 = vrot.lane.b32.xlu0 %v1896, 32
        %v1908 = vpop.permute.xlu0 %1907
        %vm1913 = vcmask 261120
        %v1914 = vsel %vm1913, %v1893, %v1902
        %v1915 = vsel %vm1913, %v1894, %v1904
        %v1916 = vsel %vm1913, %v1895, %v1906
        %v1917 = vsel %vm1913, %v1896, %v1908
        %vm1918 = vcmask 523264
        %1919 = vst.msk [vmem:[%s135] sm:$0xff] %vm1918, %v1914
        %1920 = vst.msk [vmem:[%s135 + $0x8] sm:$0xff] %vm1918, %v1915
        %1921 = vst.msk [vmem:[%s135 + $0x10] sm:$0xff] %vm1918, %v1916
        %1922 = vst.msk [vmem:[%s135 + $0x18] sm:$0xff] %vm1918, %v1917
        %s1923 = sand.u32 %s52, 1
        %s1924 = scalar_lea.sflag [#allocation4], %s1923
        %s1925 = sand.u32 %s52, 1
        %s1926 = smul.addr %s1925, 32
        %s1927 = scalar_lea.vmem [#allocation5], %s1926
        // Predicated region
        $region29: #{tpu_custom_call.1} parent=23 // pred_check
          %p1928 = pneg %p62
        $region30: #{tpu_custom_call.1} parent=23 // pred_check_branch
          %1930 = sbr.rel (%p1928) target = $region32
        $region31: #{tpu_custom_call.1} parent=23 // pred_region
          %s1931 = smul.u32 2, %s18
          %s1933 = ssub.s32 512, 512
          %1934 = vsyncadd %s1924, %s1933
          %s1935 = smul.addr %s1931, 2
          %s1936 = smul.addr %s1935, 128
          %s1937 = scalar_lea.hbm %s1, %s1936
          %s1938 = sshll.u32 %s1927, 4
          %s1939 = int_to_ptr.vmem [resolvable:$true] %s1938
          %1944 = dma.vmem_to_hbm [thread:$0]  %s1939, 512, %s1937, %s1924, 128, 128, 8
        $region32: #{tpu_custom_call.1} parent=23 // pred_fallthru
          _
      $region24: #{tpu_custom_call.1} parent=5 // pred_fallthru
        _
      %p1945 = scmp.le.s32.totalorder 2, %s13
      // Predicated region
      $region33: #{tpu_custom_call.1} parent=5 // pred_check
        %p1946 = pneg %p1945
      $region34: #{tpu_custom_call.1} parent=5 // pred_check_branch
        %1948 = sbr.rel (%p1946) target = $region36
      $region35: #{tpu_custom_call.1} parent=5 // pred_region
        %s1949 = ssub.s32 %s13, 2
        // Predicated region
        $region37: #{tpu_custom_call.1} parent=35 // pred_check
          %p1950 = pneg %p68
        $region38: #{tpu_custom_call.1} parent=35 // pred_check_branch
          %1952 = sbr.rel (%p1950) target = $region40
        $region39: #{tpu_custom_call.1} parent=35 // pred_region
          %s1953 = sand.u32 %s53, 1
          %s1954 = scalar_lea.sflag [#allocation4], %s1953
          %s1955 = sand.u32 %s53, 1
          %s1956 = smul.addr %s1955, 32
          %s1957 = scalar_lea.vmem [#allocation5], %s1956
          %1958 = dma.done %s1954, 512
        $region40: #{tpu_custom_call.1} parent=35 // pred_fallthru
          _
      $region36: #{tpu_custom_call.1} parent=5 // pred_fallthru
        _
    $region6: #{tpu_custom_call.1} parent=1 // loop_footer
      %s17 = sadd.s32 1, %s13
    $region7: #{tpu_custom_call.1} parent=1 // loop_footer_branch
      %12 = sbr.rel target = $region3
    $region8: #{tpu_custom_call.1} parent=1 // loop_exit
      _
    %1959 = vsyncpa [#allocation3], 1
    %s1960 = scalar_lea.sflag [#allocation3], 1
    %1961 = vsyncpa %s1960, 1
    %1962 = vsyncpa [#allocation4], 1
    %s1963 = scalar_lea.sflag [#allocation4], 1
    %1964 = vsyncpa %s1963, 1

</llo_original>
